<compile_context>
chip_gen: v7x
topology: tpu7x:2x2x1
jax: 0.10.0
libtpu: 0.0.40
codegen_flags: <defaults>
</compile_context>

<pallas_src>
import jax
import jax.numpy as jnp
from jax.experimental import pallas as pl
from jax.experimental.pallas import tpu as pltpu


def _endq_lstm_kernel(x_ref, wih_ref, whh_ref, b_ref, wout_ref, bout_ref,
                      out_ref):
    """LSTM over the full sequence, take last step, ReLU, Linear, 2*tanh.

    x_ref : (S*Bp, I)  bf16, flattened (seq, padded-batch) input
    wih   : (I, 4H)    bf16, gate columns ordered (i, f, o, g)
    whh   : (H, 4H)    bf16, gate columns ordered (i, f, o, g)
    b     : (1, 4H)    f32, bias_ih + bias_hh, same column order
    wout  : (H, O)     bf16
    bout  : (1, O)     f32
    out   : (Bp, O)    f32
    """
    SB, _ = x_ref.shape
    Bp = out_ref.shape[0]
    S = SB // Bp
    H = whh_ref.shape[0]
    H3 = 3 * H

    # Hoist the recurrent weight load out of the time loop (stays in vregs).
    whh = whh_ref[...]                                     # (H, 4H) bf16

    # (1)+(2) Hoisted input projection: one bf16 GEMM over all timesteps,
    # f32 accumulation, bias folded in, result kept as a local value
    # (no VMEM scratch round trip).
    gx = jnp.dot(x_ref[...], wih_ref[...],
                 preferred_element_type=jnp.float32) + b_ref[...]   # (S*Bp, 4H)

    h = jnp.zeros((Bp, H), jnp.float32)
    c = jnp.zeros((Bp, H), jnp.float32)

    # Fully unrolled recurrence: S is small & static, slices below are static
    # and vreg-aligned (Bp = 8 sublanes, 4H = 128 lanes).
    for t in range(S):
        gates = gx[t * Bp:(t + 1) * Bp, :] + jnp.dot(
            h.astype(jnp.bfloat16), whh,
            preferred_element_type=jnp.float32)            # (Bp, 4H) f32
        # Gate columns pre-permuted to (i, f, o, g): one wide sigmoid and one
        # tanh per step instead of four small transcendental calls.
        sig = jax.nn.sigmoid(gates[:, :H3])
        g_g = jnp.tanh(gates[:, H3:])
        i_g = sig[:, :H]
        f_g = sig[:, H:2 * H]
        o_g = sig[:, 2 * H:H3]
        c = f_g * c + i_g * g_g
        h = o_g * jnp.tanh(c)

    # output[-1, :] -> ReLU -> Linear -> 2*tanh
    h_relu = jnp.maximum(h, 0.0)
    y = jnp.dot(h_relu.astype(jnp.bfloat16), wout_ref[...],
                preferred_element_type=jnp.float32) + bout_ref[...]
    out_ref[...] = 2.0 * jnp.tanh(y)


def endq_lstm_forward(x, kparams):
    """x: (S, B, I) f32.  Returns (B, O) f32."""
    S, B, I = x.shape
    O = kparams["wout"].shape[1]

    # Pad the batch (sublane dim of the recurrence) to a full 8-row tile.
    Bp = ((B + 7) // 8) * 8
    x_p = x if Bp == B else jnp.pad(x, ((0, 0), (0, Bp - B), (0, 0)))
    # Layout-preserving flatten + bf16 cast done XLA-side (also halves the DMA).
    x2 = x_p.reshape(S * Bp, I).astype(jnp.bfloat16)

    vmem = pl.BlockSpec(memory_space=pltpu.MemorySpace.VMEM)
    out_p = pl.pallas_call(
        _endq_lstm_kernel,
        out_shape=jax.ShapeDtypeStruct((Bp, O), jnp.float32),
        in_specs=[vmem] * 6,
        out_specs=vmem,
    )(x2, kparams["wih"], kparams["whh"], kparams["b"],
      kparams["wout"], kparams["bout"])
    return out_p[:B]


def init_torch_params(key, in_shape, out_shape, hidden_size):
    """PyTorch-layout params, U(-1/sqrt(H), 1/sqrt(H)), gate rows (i,f,g,o)."""
    ks = jax.random.split(key, 6)
    bound = 1.0 / jnp.sqrt(hidden_size)

    def u(k, shape):
        return jax.random.uniform(k, shape, jnp.float32, -bound, bound)

    return {
        "weight_ih": u(ks[0], (4 * hidden_size, in_shape)),
        "weight_hh": u(ks[1], (4 * hidden_size, hidden_size)),
        "bias_ih": u(ks[2], (4 * hidden_size,)),
        "bias_hh": u(ks[3], (4 * hidden_size,)),
        "weight_out": u(ks[4], (out_shape, hidden_size)),
        "bias_out": u(ks[5], (out_shape,)),
    }


def prep_kernel_params(tp):
    """Transpose + permute gate blocks (i,f,g,o)->(i,f,o,g); weights in bf16."""
    def reorder(w):
        i, f, g, o = jnp.split(w, 4, axis=0)
        return jnp.concatenate([i, f, o, g], axis=0)

    return {
        "wih": jnp.transpose(reorder(tp["weight_ih"])).astype(jnp.bfloat16),   # (I, 4H)
        "whh": jnp.transpose(reorder(tp["weight_hh"])).astype(jnp.bfloat16),   # (H, 4H)
        "b": reorder(tp["bias_ih"] + tp["bias_hh"])[None, :],                  # (1, 4H) f32
        "wout": jnp.transpose(tp["weight_out"]).astype(jnp.bfloat16),          # (H, O)
        "bout": tp["bias_out"][None, :],                                       # (1, O) f32
    }


def reference_forward(x, tp):
    """Pure-JAX f32 reference of EndQLSTMNetwork.forward (PyTorch gate order)."""
    S, B, _ = x.shape
    H = tp["weight_hh"].shape[1]
    wih = tp["weight_ih"].T
    whh = tp["weight_hh"].T
    b = (tp["bias_ih"] + tp["bias_hh"])[None, :]
    h = jnp.zeros((B, H), jnp.float32)
    c = jnp.zeros((B, H), jnp.float32)
    for t in range(S):
        gates = x[t] @ wih + h @ whh + b
        i_g = jax.nn.sigmoid(gates[:, 0 * H:1 * H])
        f_g = jax.nn.sigmoid(gates[:, 1 * H:2 * H])
        g_g = jnp.tanh(gates[:, 2 * H:3 * H])
        o_g = jax.nn.sigmoid(gates[:, 3 * H:4 * H])
        c = f_g * c + i_g * g_g
        h = o_g * jnp.tanh(c)
    h = jnp.maximum(h, 0.0)
    return 2.0 * jnp.tanh(h @ tp["weight_out"].T + tp["bias_out"][None, :])


if __name__ == "__main__":
    SEQ, BATCH, IN_SHAPE, HIDDEN, OUT_SHAPE = 8, 2, 16, 32, 8

    key = jax.random.PRNGKey(0)
    k_x, k_p = jax.random.split(key)
    x = jax.random.normal(k_x, (SEQ, BATCH, IN_SHAPE), jnp.float32)

    torch_params = init_torch_params(k_p, IN_SHAPE, OUT_SHAPE, HIDDEN)
    kernel_params = prep_kernel_params(torch_params)

    out = endq_lstm_forward(x, kernel_params)
    out = jax.block_until_ready(out)

    ref = reference_forward(x, torch_params)
    assert out.shape == (BATCH, OUT_SHAPE)
    # bf16 MXU operands vs. f32 reference through 8 recurrent steps:
    # tolerance loosened accordingly (output range is [-2, 2]).
    assert jnp.allclose(out, ref, atol=1e-1, rtol=0.0), "mismatch vs JAX reference"
    print("KERNEL_OK")
</pallas_src>

<mosaic_0001>
module attributes {stable_mosaic.version = 11 : i64} {
  func.func @_endq_lstm_kernel(%arg0: memref<64x16xbf16, #tpu.memory_space<vmem>>, %arg1: memref<16x128xbf16, #tpu.memory_space<vmem>>, %arg2: memref<32x128xbf16, #tpu.memory_space<vmem>>, %arg3: memref<1x128xf32, #tpu.memory_space<vmem>>, %arg4: memref<32x8xbf16, #tpu.memory_space<vmem>>, %arg5: memref<1x8xf32, #tpu.memory_space<vmem>>, %arg6: memref<8x8xf32, #tpu.memory_space<vmem>>) attributes {dimension_semantics = [], scalar_prefetch = 0 : i64, scratch_operands = 0 : i64, tpu.core_type = #tpu.core_type<tc>} {
    %c0 = arith.constant 0 : index
    %c0_0 = arith.constant 0 : index
    %0 = vector.load %arg2[%c0, %c0_0] : memref<32x128xbf16, #tpu.memory_space<vmem>>, vector<32x128xbf16>
    %c0_1 = arith.constant 0 : index
    %c0_2 = arith.constant 0 : index
    %1 = vector.load %arg0[%c0_1, %c0_2] : memref<64x16xbf16, #tpu.memory_space<vmem>>, vector<64x16xbf16>
    %c0_3 = arith.constant 0 : index
    %c0_4 = arith.constant 0 : index
    %2 = vector.load %arg1[%c0_3, %c0_4] : memref<16x128xbf16, #tpu.memory_space<vmem>>, vector<16x128xbf16>
    %cst = arith.constant dense<0.000000e+00> : vector<64x128xf32>
    %3 = tpu.matmul %1, %2, %cst {dimension_numbers = #tpu.dot_dimension_numbers<[1], [0], [0], [1], [0, 0, 1, 1], [], []>} : vector<64x16xbf16>, vector<16x128xbf16>, vector<64x128xf32> -> vector<64x128xf32>
    %c0_5 = arith.constant 0 : index
    %c0_6 = arith.constant 0 : index
    %4 = vector.load %arg3[%c0_5, %c0_6] : memref<1x128xf32, #tpu.memory_space<vmem>>, vector<1x128xf32>
    %5 = vector.broadcast %4 : vector<1x128xf32> to vector<64x128xf32>
    %6 = arith.addf %3, %5 : vector<64x128xf32>
    %cst_7 = arith.constant 0.000000e+00 : f32
    %7 = vector.broadcast %cst_7 : f32 to vector<8x32xf32>
    %cst_8 = arith.constant 0.000000e+00 : f32
    %8 = vector.broadcast %cst_8 : f32 to vector<8x32xf32>
    %9 = vector.extract_strided_slice %6 {offsets = [0, 0], sizes = [8, 128], strides = [1, 1]} : vector<64x128xf32> to vector<8x128xf32>
    %10 = arith.truncf %7 : vector<8x32xf32> to vector<8x32xbf16>
    %cst_9 = arith.constant dense<0.000000e+00> : vector<8x128xf32>
    %11 = tpu.matmul %10, %0, %cst_9 {dimension_numbers = #tpu.dot_dimension_numbers<[1], [0], [0], [1], [0, 0, 1, 1], [], []>} : vector<8x32xbf16>, vector<32x128xbf16>, vector<8x128xf32> -> vector<8x128xf32>
    %12 = arith.addf %9, %11 : vector<8x128xf32>
    %13 = vector.extract_strided_slice %12 {offsets = [0, 0], sizes = [8, 96], strides = [1, 1]} : vector<8x128xf32> to vector<8x96xf32>
    %14 = arith.negf %13 : vector<8x96xf32>
    %15 = math.exp %14 : vector<8x96xf32>
    %cst_10 = arith.constant 1.000000e+00 : f32
    %16 = vector.broadcast %cst_10 : f32 to vector<8x96xf32>
    %17 = arith.addf %16, %15 : vector<8x96xf32>
    %18 = arith.divf %16, %17 : vector<8x96xf32>
    %19 = vector.extract_strided_slice %12 {offsets = [0, 96], sizes = [8, 32], strides = [1, 1]} : vector<8x128xf32> to vector<8x32xf32>
    %20 = math.tanh %19 : vector<8x32xf32>
    %21 = vector.extract_strided_slice %18 {offsets = [0, 0], sizes = [8, 32], strides = [1, 1]} : vector<8x96xf32> to vector<8x32xf32>
    %22 = vector.extract_strided_slice %18 {offsets = [0, 32], sizes = [8, 32], strides = [1, 1]} : vector<8x96xf32> to vector<8x32xf32>
    %23 = vector.extract_strided_slice %18 {offsets = [0, 64], sizes = [8, 32], strides = [1, 1]} : vector<8x96xf32> to vector<8x32xf32>
    %24 = arith.mulf %22, %8 : vector<8x32xf32>
    %25 = arith.mulf %21, %20 : vector<8x32xf32>
    %26 = arith.addf %24, %25 : vector<8x32xf32>
    %27 = math.tanh %26 : vector<8x32xf32>
    %28 = arith.mulf %23, %27 : vector<8x32xf32>
    %29 = vector.extract_strided_slice %6 {offsets = [8, 0], sizes = [8, 128], strides = [1, 1]} : vector<64x128xf32> to vector<8x128xf32>
    %30 = arith.truncf %28 : vector<8x32xf32> to vector<8x32xbf16>
    %cst_11 = arith.constant dense<0.000000e+00> : vector<8x128xf32>
    %31 = tpu.matmul %30, %0, %cst_11 {dimension_numbers = #tpu.dot_dimension_numbers<[1], [0], [0], [1], [0, 0, 1, 1], [], []>} : vector<8x32xbf16>, vector<32x128xbf16>, vector<8x128xf32> -> vector<8x128xf32>
    %32 = arith.addf %29, %31 : vector<8x128xf32>
    %33 = vector.extract_strided_slice %32 {offsets = [0, 0], sizes = [8, 96], strides = [1, 1]} : vector<8x128xf32> to vector<8x96xf32>
    %34 = arith.negf %33 : vector<8x96xf32>
    %35 = math.exp %34 : vector<8x96xf32>
    %cst_12 = arith.constant 1.000000e+00 : f32
    %36 = vector.broadcast %cst_12 : f32 to vector<8x96xf32>
    %37 = arith.addf %36, %35 : vector<8x96xf32>
    %38 = arith.divf %36, %37 : vector<8x96xf32>
    %39 = vector.extract_strided_slice %32 {offsets = [0, 96], sizes = [8, 32], strides = [1, 1]} : vector<8x128xf32> to vector<8x32xf32>
    %40 = math.tanh %39 : vector<8x32xf32>
    %41 = vector.extract_strided_slice %38 {offsets = [0, 0], sizes = [8, 32], strides = [1, 1]} : vector<8x96xf32> to vector<8x32xf32>
    %42 = vector.extract_strided_slice %38 {offsets = [0, 32], sizes = [8, 32], strides = [1, 1]} : vector<8x96xf32> to vector<8x32xf32>
    %43 = vector.extract_strided_slice %38 {offsets = [0, 64], sizes = [8, 32], strides = [1, 1]} : vector<8x96xf32> to vector<8x32xf32>
    %44 = arith.mulf %42, %26 : vector<8x32xf32>
    %45 = arith.mulf %41, %40 : vector<8x32xf32>
    %46 = arith.addf %44, %45 : vector<8x32xf32>
    %47 = math.tanh %46 : vector<8x32xf32>
    %48 = arith.mulf %43, %47 : vector<8x32xf32>
    %49 = vector.extract_strided_slice %6 {offsets = [16, 0], sizes = [8, 128], strides = [1, 1]} : vector<64x128xf32> to vector<8x128xf32>
    %50 = arith.truncf %48 : vector<8x32xf32> to vector<8x32xbf16>
    %cst_13 = arith.constant dense<0.000000e+00> : vector<8x128xf32>
    %51 = tpu.matmul %50, %0, %cst_13 {dimension_numbers = #tpu.dot_dimension_numbers<[1], [0], [0], [1], [0, 0, 1, 1], [], []>} : vector<8x32xbf16>, vector<32x128xbf16>, vector<8x128xf32> -> vector<8x128xf32>
    %52 = arith.addf %49, %51 : vector<8x128xf32>
    %53 = vector.extract_strided_slice %52 {offsets = [0, 0], sizes = [8, 96], strides = [1, 1]} : vector<8x128xf32> to vector<8x96xf32>
    %54 = arith.negf %53 : vector<8x96xf32>
    %55 = math.exp %54 : vector<8x96xf32>
    %cst_14 = arith.constant 1.000000e+00 : f32
    %56 = vector.broadcast %cst_14 : f32 to vector<8x96xf32>
    %57 = arith.addf %56, %55 : vector<8x96xf32>
    %58 = arith.divf %56, %57 : vector<8x96xf32>
    %59 = vector.extract_strided_slice %52 {offsets = [0, 96], sizes = [8, 32], strides = [1, 1]} : vector<8x128xf32> to vector<8x32xf32>
    %60 = math.tanh %59 : vector<8x32xf32>
    %61 = vector.extract_strided_slice %58 {offsets = [0, 0], sizes = [8, 32], strides = [1, 1]} : vector<8x96xf32> to vector<8x32xf32>
    %62 = vector.extract_strided_slice %58 {offsets = [0, 32], sizes = [8, 32], strides = [1, 1]} : vector<8x96xf32> to vector<8x32xf32>
    %63 = vector.extract_strided_slice %58 {offsets = [0, 64], sizes = [8, 32], strides = [1, 1]} : vector<8x96xf32> to vector<8x32xf32>
    %64 = arith.mulf %62, %46 : vector<8x32xf32>
    %65 = arith.mulf %61, %60 : vector<8x32xf32>
    %66 = arith.addf %64, %65 : vector<8x32xf32>
    %67 = math.tanh %66 : vector<8x32xf32>
    %68 = arith.mulf %63, %67 : vector<8x32xf32>
    %69 = vector.extract_strided_slice %6 {offsets = [24, 0], sizes = [8, 128], strides = [1, 1]} : vector<64x128xf32> to vector<8x128xf32>
    %70 = arith.truncf %68 : vector<8x32xf32> to vector<8x32xbf16>
    %cst_15 = arith.constant dense<0.000000e+00> : vector<8x128xf32>
    %71 = tpu.matmul %70, %0, %cst_15 {dimension_numbers = #tpu.dot_dimension_numbers<[1], [0], [0], [1], [0, 0, 1, 1], [], []>} : vector<8x32xbf16>, vector<32x128xbf16>, vector<8x128xf32> -> vector<8x128xf32>
    %72 = arith.addf %69, %71 : vector<8x128xf32>
    %73 = vector.extract_strided_slice %72 {offsets = [0, 0], sizes = [8, 96], strides = [1, 1]} : vector<8x128xf32> to vector<8x96xf32>
    %74 = arith.negf %73 : vector<8x96xf32>
    %75 = math.exp %74 : vector<8x96xf32>
    %cst_16 = arith.constant 1.000000e+00 : f32
    %76 = vector.broadcast %cst_16 : f32 to vector<8x96xf32>
    %77 = arith.addf %76, %75 : vector<8x96xf32>
    %78 = arith.divf %76, %77 : vector<8x96xf32>
    %79 = vector.extract_strided_slice %72 {offsets = [0, 96], sizes = [8, 32], strides = [1, 1]} : vector<8x128xf32> to vector<8x32xf32>
    %80 = math.tanh %79 : vector<8x32xf32>
    %81 = vector.extract_strided_slice %78 {offsets = [0, 0], sizes = [8, 32], strides = [1, 1]} : vector<8x96xf32> to vector<8x32xf32>
    %82 = vector.extract_strided_slice %78 {offsets = [0, 32], sizes = [8, 32], strides = [1, 1]} : vector<8x96xf32> to vector<8x32xf32>
    %83 = vector.extract_strided_slice %78 {offsets = [0, 64], sizes = [8, 32], strides = [1, 1]} : vector<8x96xf32> to vector<8x32xf32>
    %84 = arith.mulf %82, %66 : vector<8x32xf32>
    %85 = arith.mulf %81, %80 : vector<8x32xf32>
    %86 = arith.addf %84, %85 : vector<8x32xf32>
    %87 = math.tanh %86 : vector<8x32xf32>
    %88 = arith.mulf %83, %87 : vector<8x32xf32>
    %89 = vector.extract_strided_slice %6 {offsets = [32, 0], sizes = [8, 128], strides = [1, 1]} : vector<64x128xf32> to vector<8x128xf32>
    %90 = arith.truncf %88 : vector<8x32xf32> to vector<8x32xbf16>
    %cst_17 = arith.constant dense<0.000000e+00> : vector<8x128xf32>
    %91 = tpu.matmul %90, %0, %cst_17 {dimension_numbers = #tpu.dot_dimension_numbers<[1], [0], [0], [1], [0, 0, 1, 1], [], []>} : vector<8x32xbf16>, vector<32x128xbf16>, vector<8x128xf32> -> vector<8x128xf32>
    %92 = arith.addf %89, %91 : vector<8x128xf32>
    %93 = vector.extract_strided_slice %92 {offsets = [0, 0], sizes = [8, 96], strides = [1, 1]} : vector<8x128xf32> to vector<8x96xf32>
    %94 = arith.negf %93 : vector<8x96xf32>
    %95 = math.exp %94 : vector<8x96xf32>
    %cst_18 = arith.constant 1.000000e+00 : f32
    %96 = vector.broadcast %cst_18 : f32 to vector<8x96xf32>
    %97 = arith.addf %96, %95 : vector<8x96xf32>
    %98 = arith.divf %96, %97 : vector<8x96xf32>
    %99 = vector.extract_strided_slice %92 {offsets = [0, 96], sizes = [8, 32], strides = [1, 1]} : vector<8x128xf32> to vector<8x32xf32>
    %100 = math.tanh %99 : vector<8x32xf32>
    %101 = vector.extract_strided_slice %98 {offsets = [0, 0], sizes = [8, 32], strides = [1, 1]} : vector<8x96xf32> to vector<8x32xf32>
    %102 = vector.extract_strided_slice %98 {offsets = [0, 32], sizes = [8, 32], strides = [1, 1]} : vector<8x96xf32> to vector<8x32xf32>
    %103 = vector.extract_strided_slice %98 {offsets = [0, 64], sizes = [8, 32], strides = [1, 1]} : vector<8x96xf32> to vector<8x32xf32>
    %104 = arith.mulf %102, %86 : vector<8x32xf32>
    %105 = arith.mulf %101, %100 : vector<8x32xf32>
    %106 = arith.addf %104, %105 : vector<8x32xf32>
    %107 = math.tanh %106 : vector<8x32xf32>
    %108 = arith.mulf %103, %107 : vector<8x32xf32>
    %109 = vector.extract_strided_slice %6 {offsets = [40, 0], sizes = [8, 128], strides = [1, 1]} : vector<64x128xf32> to vector<8x128xf32>
    %110 = arith.truncf %108 : vector<8x32xf32> to vector<8x32xbf16>
    %cst_19 = arith.constant dense<0.000000e+00> : vector<8x128xf32>
    %111 = tpu.matmul %110, %0, %cst_19 {dimension_numbers = #tpu.dot_dimension_numbers<[1], [0], [0], [1], [0, 0, 1, 1], [], []>} : vector<8x32xbf16>, vector<32x128xbf16>, vector<8x128xf32> -> vector<8x128xf32>
    %112 = arith.addf %109, %111 : vector<8x128xf32>
    %113 = vector.extract_strided_slice %112 {offsets = [0, 0], sizes = [8, 96], strides = [1, 1]} : vector<8x128xf32> to vector<8x96xf32>
    %114 = arith.negf %113 : vector<8x96xf32>
    %115 = math.exp %114 : vector<8x96xf32>
    %cst_20 = arith.constant 1.000000e+00 : f32
    %116 = vector.broadcast %cst_20 : f32 to vector<8x96xf32>
    %117 = arith.addf %116, %115 : vector<8x96xf32>
    %118 = arith.divf %116, %117 : vector<8x96xf32>
    %119 = vector.extract_strided_slice %112 {offsets = [0, 96], sizes = [8, 32], strides = [1, 1]} : vector<8x128xf32> to vector<8x32xf32>
    %120 = math.tanh %119 : vector<8x32xf32>
    %121 = vector.extract_strided_slice %118 {offsets = [0, 0], sizes = [8, 32], strides = [1, 1]} : vector<8x96xf32> to vector<8x32xf32>
    %122 = vector.extract_strided_slice %118 {offsets = [0, 32], sizes = [8, 32], strides = [1, 1]} : vector<8x96xf32> to vector<8x32xf32>
    %123 = vector.extract_strided_slice %118 {offsets = [0, 64], sizes = [8, 32], strides = [1, 1]} : vector<8x96xf32> to vector<8x32xf32>
    %124 = arith.mulf %122, %106 : vector<8x32xf32>
    %125 = arith.mulf %121, %120 : vector<8x32xf32>
    %126 = arith.addf %124, %125 : vector<8x32xf32>
    %127 = math.tanh %126 : vector<8x32xf32>
    %128 = arith.mulf %123, %127 : vector<8x32xf32>
    %129 = vector.extract_strided_slice %6 {offsets = [48, 0], sizes = [8, 128], strides = [1, 1]} : vector<64x128xf32> to vector<8x128xf32>
    %130 = arith.truncf %128 : vector<8x32xf32> to vector<8x32xbf16>
    %cst_21 = arith.constant dense<0.000000e+00> : vector<8x128xf32>
    %131 = tpu.matmul %130, %0, %cst_21 {dimension_numbers = #tpu.dot_dimension_numbers<[1], [0], [0], [1], [0, 0, 1, 1], [], []>} : vector<8x32xbf16>, vector<32x128xbf16>, vector<8x128xf32> -> vector<8x128xf32>
    %132 = arith.addf %129, %131 : vector<8x128xf32>
    %133 = vector.extract_strided_slice %132 {offsets = [0, 0], sizes = [8, 96], strides = [1, 1]} : vector<8x128xf32> to vector<8x96xf32>
    %134 = arith.negf %133 : vector<8x96xf32>
    %135 = math.exp %134 : vector<8x96xf32>
    %cst_22 = arith.constant 1.000000e+00 : f32
    %136 = vector.broadcast %cst_22 : f32 to vector<8x96xf32>
    %137 = arith.addf %136, %135 : vector<8x96xf32>
    %138 = arith.divf %136, %137 : vector<8x96xf32>
    %139 = vector.extract_strided_slice %132 {offsets = [0, 96], sizes = [8, 32], strides = [1, 1]} : vector<8x128xf32> to vector<8x32xf32>
    %140 = math.tanh %139 : vector<8x32xf32>
    %141 = vector.extract_strided_slice %138 {offsets = [0, 0], sizes = [8, 32], strides = [1, 1]} : vector<8x96xf32> to vector<8x32xf32>
    %142 = vector.extract_strided_slice %138 {offsets = [0, 32], sizes = [8, 32], strides = [1, 1]} : vector<8x96xf32> to vector<8x32xf32>
    %143 = vector.extract_strided_slice %138 {offsets = [0, 64], sizes = [8, 32], strides = [1, 1]} : vector<8x96xf32> to vector<8x32xf32>
    %144 = arith.mulf %142, %126 : vector<8x32xf32>
    %145 = arith.mulf %141, %140 : vector<8x32xf32>
    %146 = arith.addf %144, %145 : vector<8x32xf32>
    %147 = math.tanh %146 : vector<8x32xf32>
    %148 = arith.mulf %143, %147 : vector<8x32xf32>
    %149 = vector.extract_strided_slice %6 {offsets = [56, 0], sizes = [8, 128], strides = [1, 1]} : vector<64x128xf32> to vector<8x128xf32>
    %150 = arith.truncf %148 : vector<8x32xf32> to vector<8x32xbf16>
    %cst_23 = arith.constant dense<0.000000e+00> : vector<8x128xf32>
    %151 = tpu.matmul %150, %0, %cst_23 {dimension_numbers = #tpu.dot_dimension_numbers<[1], [0], [0], [1], [0, 0, 1, 1], [], []>} : vector<8x32xbf16>, vector<32x128xbf16>, vector<8x128xf32> -> vector<8x128xf32>
    %152 = arith.addf %149, %151 : vector<8x128xf32>
    %153 = vector.extract_strided_slice %152 {offsets = [0, 0], sizes = [8, 96], strides = [1, 1]} : vector<8x128xf32> to vector<8x96xf32>
    %154 = arith.negf %153 : vector<8x96xf32>
    %155 = math.exp %154 : vector<8x96xf32>
    %cst_24 = arith.constant 1.000000e+00 : f32
    %156 = vector.broadcast %cst_24 : f32 to vector<8x96xf32>
    %157 = arith.addf %156, %155 : vector<8x96xf32>
    %158 = arith.divf %156, %157 : vector<8x96xf32>
    %159 = vector.extract_strided_slice %152 {offsets = [0, 96], sizes = [8, 32], strides = [1, 1]} : vector<8x128xf32> to vector<8x32xf32>
    %160 = math.tanh %159 : vector<8x32xf32>
    %161 = vector.extract_strided_slice %158 {offsets = [0, 0], sizes = [8, 32], strides = [1, 1]} : vector<8x96xf32> to vector<8x32xf32>
    %162 = vector.extract_strided_slice %158 {offsets = [0, 32], sizes = [8, 32], strides = [1, 1]} : vector<8x96xf32> to vector<8x32xf32>
    %163 = vector.extract_strided_slice %158 {offsets = [0, 64], sizes = [8, 32], strides = [1, 1]} : vector<8x96xf32> to vector<8x32xf32>
    %164 = arith.mulf %162, %146 : vector<8x32xf32>
    %165 = arith.mulf %161, %160 : vector<8x32xf32>
    %166 = arith.addf %164, %165 : vector<8x32xf32>
    %167 = math.tanh %166 : vector<8x32xf32>
    %168 = arith.mulf %163, %167 : vector<8x32xf32>
    %cst_25 = arith.constant 0.000000e+00 : f32
    %169 = vector.broadcast %cst_25 : f32 to vector<8x32xf32>
    %170 = arith.maximumf %168, %169 : vector<8x32xf32>
    %171 = arith.truncf %170 : vector<8x32xf32> to vector<8x32xbf16>
    %c0_26 = arith.constant 0 : index
    %c0_27 = arith.constant 0 : index
    %172 = vector.load %arg4[%c0_26, %c0_27] : memref<32x8xbf16, #tpu.memory_space<vmem>>, vector<32x8xbf16>
    %cst_28 = arith.constant dense<0.000000e+00> : vector<8x8xf32>
    %173 = tpu.matmul %171, %172, %cst_28 {dimension_numbers = #tpu.dot_dimension_numbers<[1], [0], [0], [1], [0, 0, 1, 1], [], []>} : vector<8x32xbf16>, vector<32x8xbf16>, vector<8x8xf32> -> vector<8x8xf32>
    %c0_29 = arith.constant 0 : index
    %c0_30 = arith.constant 0 : index
    %174 = vector.load %arg5[%c0_29, %c0_30] : memref<1x8xf32, #tpu.memory_space<vmem>>, vector<1x8xf32>
    %175 = vector.broadcast %174 : vector<1x8xf32> to vector<8x8xf32>
    %176 = arith.addf %173, %175 : vector<8x8xf32>
    %177 = math.tanh %176 : vector<8x8xf32>
    %cst_31 = arith.constant 2.000000e+00 : f32
    %178 = vector.broadcast %cst_31 : f32 to vector<8x8xf32>
    %179 = arith.mulf %178, %177 : vector<8x8xf32>
    %c0_32 = arith.constant 0 : index
    %c0_33 = arith.constant 0 : index
    %180 = vector.load %arg6[%c0_32, %c0_33] : memref<8x8xf32, #tpu.memory_space<vmem>>, vector<8x8xf32>
    tpu.vector_store %arg6[%c0_32, %c0_33], %179 {strides = array<i32>} : memref<8x8xf32, #tpu.memory_space<vmem>>, vector<8x8xf32>,
    return
  }
}

</mosaic_0001>

<llo_original>
// kernel: tpu_custom_call.1
$region0: #{tpu_custom_call.1}
  #allocation0 [shape = 'u32[]', space=smem, size = 0x4, offset = 0x4, fixed_abs, tag = 'smem constant byte address 0x4 - core index']
  #allocation1 [shape = 'u32[144,128]{1,0:T(1,128)}', space=vmem, size = 0x12000, scoped, tag = 'internal scratch']
  %s0 = inlined_call_operand.vmem [shape: bf16[64,16], index: 0, kind: input, shape index: {}]
  %s1 = inlined_call_operand.vmem [shape: bf16[16,128], index: 1, kind: input, shape index: {}]
  %s2 = inlined_call_operand.vmem [shape: bf16[32,128], index: 2, kind: input, shape index: {}]
  %s3 = inlined_call_operand.vmem [shape: f32[1,128], index: 3, kind: input, shape index: {}]
  %s4 = inlined_call_operand.vmem [shape: bf16[32,8], index: 4, kind: input, shape index: {}]
  %s5 = inlined_call_operand.vmem [shape: f32[1,8], index: 5, kind: input, shape index: {}]
  %s6 = inlined_call_operand.hbm [shape: f32[8,8], index: 6, kind: output, shape index: {}]
  %s7 = sld [smem:[#allocation0]]
  $region34: #{tpu_custom_call.1} parent=0
    _
  %s9 = ssub.s32 1, %s7
  %s10 = scalar_select 0, %s9, %s7
  $region1: #{tpu_custom_call.1} parent=0
    #allocation2 [shape = 'u8[4096]{0}', space=vmem, size = 0x1000, scoped, tag = 'output window, operand 0, single buffered']
    #allocation3 [shape = 's32[1]{0}', space=sflag, size = 0x4, scoped, tag = 'scoped memory for tpu_custom_call.1']
    %11 = vsyncpa [#allocation3], 0
    // Predicated region
    $region2: #{tpu_custom_call.1} parent=1 // pred_check
      _
    $region3: #{tpu_custom_call.1} parent=1 // pred_check_branch
      %13 = sbr.rel (0) target = $region5
    $region4: #{tpu_custom_call.1} parent=1 // pred_region
      _
    $region5: #{tpu_custom_call.1} parent=1 // pred_fallthru
      _
    // Predicated region
    $region6: #{tpu_custom_call.1} parent=1 // pred_check
      _
    $region7: #{tpu_custom_call.1} parent=1 // pred_check_branch
      %15 = sbr.rel (0) target = $region9
    $region8: #{tpu_custom_call.1} parent=1 // pred_region
      _
    $region9: #{tpu_custom_call.1} parent=1 // pred_fallthru
      _
    // Predicated region
    $region10: #{tpu_custom_call.1} parent=1 // pred_check
      _
    $region11: #{tpu_custom_call.1} parent=1 // pred_check_branch
      %17 = sbr.rel (0) target = $region13
    $region12: #{tpu_custom_call.1} parent=1 // pred_region
      _
    $region13: #{tpu_custom_call.1} parent=1 // pred_fallthru
      _
    // Predicated region
    $region14: #{tpu_custom_call.1} parent=1 // pred_check
      _
    $region15: #{tpu_custom_call.1} parent=1 // pred_check_branch
      %19 = sbr.rel (0) target = $region17
    $region16: #{tpu_custom_call.1} parent=1 // pred_region
      _
    $region17: #{tpu_custom_call.1} parent=1 // pred_fallthru
      _
    // Predicated region
    $region18: #{tpu_custom_call.1} parent=1 // pred_check
      _
    $region19: #{tpu_custom_call.1} parent=1 // pred_check_branch
      %21 = sbr.rel (0) target = $region21
    $region20: #{tpu_custom_call.1} parent=1 // pred_region
      _
    $region21: #{tpu_custom_call.1} parent=1 // pred_fallthru
      _
    // Predicated region
    $region22: #{tpu_custom_call.1} parent=1 // pred_check
      _
    $region23: #{tpu_custom_call.1} parent=1 // pred_check_branch
      %23 = sbr.rel (0) target = $region25
    $region24: #{tpu_custom_call.1} parent=1 // pred_region
      _
    $region25: #{tpu_custom_call.1} parent=1 // pred_fallthru
      _
    %v25 = vld [vmem:[%s2] sm:$0xf]
    %v26 = vld [vmem:[%s2 + $0x4] sm:$0xf]
    %v27 = vld [vmem:[%s2 + $0x8] sm:$0xf]
    %v28 = vld [vmem:[%s2 + $0xc] sm:$0xf]
    %v29 = vld [vmem:[%s0] sm:$0xf]
    %v30 = vld [vmem:[%s0 + $0x4] sm:$0xf]
    %v31 = vld [vmem:[%s0 + $0x8] sm:$0xf]
    %v32 = vld [vmem:[%s0 + $0xc] sm:$0xf]
    %v33 = vld [vmem:[%s0 + $0x10] sm:$0xf]
    %v34 = vld [vmem:[%s0 + $0x14] sm:$0xf]
    %v35 = vld [vmem:[%s0 + $0x18] sm:$0xf]
    %v36 = vld [vmem:[%s0 + $0x1c] sm:$0xf]
    %v37 = vld [vmem:[%s1] sm:$0xf]
    %v38 = vld [vmem:[%s1 + $0x4] sm:$0xf]
    %v39 = vld [vmem:[%s3] sm:$0x1]
    %v41 = vlaneseq
    %v42 = vshrl.u32 %v41, 7
    %v43 = vsub.s32 0, %v42
    %v44 = vrot.slane %v39, %v43
    %v54 = vunpack.c.l.b16 %v29
    %v55 = vunpack.c.l.b16 %v30
    %v56 = vunpack.c.l.b16 %v31
    %v57 = vunpack.c.l.b16 %v32
    %v58 = vunpack.c.l.b16 %v33
    %v59 = vunpack.c.l.b16 %v34
    %v60 = vunpack.c.l.b16 %v35
    %v61 = vunpack.c.l.b16 %v36
    %v62 = vpack.c.b16 %v55, %v54
    %v63 = vpack.c.b16 %v57, %v56
    %v64 = vpack.c.b16 %v59, %v58
    %v65 = vpack.c.b16 %v61, %v60
    %v68 = vunpack.c.l.b16 %v37
    %v69 = vunpack.c.l.b16 %v38
    %v70 = vpack.c.b16 %v69, %v68
    %vm72 = vcmask 130048
    %v74 = vsel %vm72, %v62, 0
    %v77 = vsel %vm72, %v63, 0
    %v80 = vsel %vm72, %v64, 0
    %v83 = vsel %vm72, %v65, 0
    %85 = vmatprep.subr.bf16.mxu0 0
    %86 = vmatpush1.bf16.msra.mxu0 %v70
    %87 = vmatprep.subr.bf16.mxu0 0
    %88 = vmatpush1.bf16.msra.mxu0 0
    %89 = vmatprep.subr.bf16.mxu0 0
    %90 = vmatpush1.bf16.msra.mxu0 0
    %91 = vmatprep.subr.bf16.mxu0 0
    %92 = vmatpush1.bf16.msra.mxu0 0
    %93 = vmatprep.subr.bf16.mxu0 0
    %94 = vmatpush1.bf16.msra.mxu0 0
    %95 = vmatprep.subr.bf16.mxu0 0
    %96 = vmatpush1.bf16.msra.mxu0 0
    %97 = vmatprep.subr.bf16.mxu0 0
    %98 = vmatpush1.bf16.msra.mxu0 0
    %99 = vmatprep.subr.bf16.mxu0 0
    %100 = vmatpush1.bf16.msra.mxu0 0
    %101 = vmatprep.subr.bf16.mxu0 0
    %102 = vmatpush1.bf16.msra.mxu0 0
    %103 = vmatprep.subr.bf16.mxu0 0
    %104 = vmatpush1.bf16.msra.mxu0 0
    %105 = vmatprep.subr.bf16.mxu0 0
    %106 = vmatpush1.bf16.msra.mxu0 0
    %107 = vmatprep.subr.bf16.mxu0 0
    %108 = vmatpush1.bf16.msra.mxu0 0
    %109 = vmatprep.subr.bf16.mxu0 0
    %110 = vmatpush1.bf16.msra.mxu0 0
    %111 = vmatprep.subr.bf16.mxu0 0
    %112 = vmatpush1.bf16.msra.mxu0 0
    %113 = vmatprep.subr.bf16.mxu0 0
    %114 = vmatpush1.bf16.msra.mxu0 0
    %115 = vmatprep.subr.bf16.mxu0 0
    %116 = vmatpush1.bf16.msra.mxu0 0
    %117 = vmatprep.mubr.bf16.mxu0 0
    %118 = vmatmul.mubr.bf16.gmra.mrb[0].mxu0 %v74
    %v119 = vpop.f32.mrb[0].mxu0
    %v120 = vadd.f32 %v44, %v119
    %v121 = vpop.f32.mrb[0].mxu0
    %v122 = vpop.f32.mrb[0].mxu0
    %v123 = vadd.f32 %v44, %v122
    %v124 = vpop.f32.mrb[0].mxu0
    %125 = vmatprep.mubr.bf16.mxu0 0
    %126 = vmatmul.mubr.bf16.gmra.mrb[0].mxu0 %v77
    %v127 = vpop.f32.mrb[0].mxu0
    %v128 = vadd.f32 %v44, %v127
    %v129 = vpop.f32.mrb[0].mxu0
    %v130 = vpop.f32.mrb[0].mxu0
    %v131 = vadd.f32 %v44, %v130
    %v132 = vpop.f32.mrb[0].mxu0
    %133 = vmatprep.mubr.bf16.mxu0 0
    %134 = vmatmul.mubr.bf16.gmra.mrb[0].mxu0 %v80
    %v135 = vpop.f32.mrb[0].mxu0
    %v136 = vadd.f32 %v44, %v135
    %v137 = vpop.f32.mrb[0].mxu0
    %v138 = vpop.f32.mrb[0].mxu0
    %v139 = vadd.f32 %v44, %v138
    %v140 = vpop.f32.mrb[0].mxu0
    %141 = vmatprep.mubr.bf16.mxu0 0
    %142 = vmatmul.mubr.bf16.gmra.mrb[0].mxu0 %v83
    %v143 = vpop.f32.mrb[0].mxu0
    %v144 = vadd.f32 %v44, %v143
    %v145 = vpop.f32.mrb[0].mxu0
    %v146 = vpop.f32.mrb[0].mxu0
    %v147 = vadd.f32 %v44, %v146
    %v148 = vpop.f32.mrb[0].mxu0
    %149 = vdwg.mxu0
    %v154 = vunpack.c.l.b16 %v25
    %v155 = vunpack.c.l.b16 %v26
    %v156 = vunpack.c.l.b16 %v27
    %v157 = vunpack.c.l.b16 %v28
    %v158 = vpack.c.b16 %v155, %v154
    %v159 = vpack.c.b16 %v157, %v156
    %vm162 = vcmask 261120
    %v164 = vsel %vm162, 0, 0
    %166 = vmatprep.subr.bf16.mxu0 0
    %167 = vmatpush1.bf16.msra.mxu0 %v158
    %168 = vmatprep.subr.bf16.mxu0 0
    %169 = vmatpush1.bf16.msra.mxu0 %v159
    %170 = vmatprep.subr.bf16.mxu0 0
    %171 = vmatpush1.bf16.msra.mxu0 0
    %172 = vmatprep.subr.bf16.mxu0 0
    %173 = vmatpush1.bf16.msra.mxu0 0
    %174 = vmatprep.subr.bf16.mxu0 0
    %175 = vmatpush1.bf16.msra.mxu0 0
    %176 = vmatprep.subr.bf16.mxu0 0
    %177 = vmatpush1.bf16.msra.mxu0 0
    %178 = vmatprep.subr.bf16.mxu0 0
    %179 = vmatpush1.bf16.msra.mxu0 0
    %180 = vmatprep.subr.bf16.mxu0 0
    %181 = vmatpush1.bf16.msra.mxu0 0
    %182 = vmatprep.subr.bf16.mxu0 0
    %183 = vmatpush1.bf16.msra.mxu0 0
    %184 = vmatprep.subr.bf16.mxu0 0
    %185 = vmatpush1.bf16.msra.mxu0 0
    %186 = vmatprep.subr.bf16.mxu0 0
    %187 = vmatpush1.bf16.msra.mxu0 0
    %188 = vmatprep.subr.bf16.mxu0 0
    %189 = vmatpush1.bf16.msra.mxu0 0
    %190 = vmatprep.subr.bf16.mxu0 0
    %191 = vmatpush1.bf16.msra.mxu0 0
    %192 = vmatprep.subr.bf16.mxu0 0
    %193 = vmatpush1.bf16.msra.mxu0 0
    %194 = vmatprep.subr.bf16.mxu0 0
    %195 = vmatpush1.bf16.msra.mxu0 0
    %196 = vmatprep.subr.bf16.mxu0 0
    %197 = vmatpush1.bf16.msra.mxu0 0
    %198 = vmatprep.mubr.bf16.mxu0 0
    %199 = vmatmul.mubr.bf16.gmra.mrb[0].mxu0 %v164
    %v200 = vpop.f32.mrb[0].mxu0
    %v201 = vadd.f32 0.0, %v200
    %v202 = vpop.f32.mrb[0].mxu0
    %v203 = vpop.f32.mrb[0].mxu0
    %v204 = vpop.f32.mrb[0].mxu0
    %205 = vdwg.mxu0
    %v206 = vadd.f32 %v120, %v201
    %v207 = vxor.u32 %v206, 2147483648
    %v208 = vmul.f32 %v207, 1.442695
    %v209 = vpow.pop %v208
    %v210 = vadd.f32 %v209, 1.0
    %v211 = vrcp.pop %v210
    %v212 = vmul.f32 1.0, %v211
    %v213 = vtanh.pop %v206
    %v214 = vmul.f32 %v212, 0.0
    %216 = vrot.lane.b32.xlu0 %v213, 32
    %v217 = vpop.permute.xlu0 %216
    %v219 = vmul.f32 %v212, %v217
    %221 = vrot.lane.b32.xlu0 %v219, 32
    %v222 = vpop.permute.xlu0 %221
    %v224 = vadd.f32 %v214, %v222
    %v225 = vtanh.pop %v224
    %227 = vrot.lane.b32.xlu0 %v225, 32
    %v228 = vpop.permute.xlu0 %227
    %v230 = vmul.f32 %v212, %v228
    %v231 = vpack.c.bf16 %v230, %v230
    %233 = vrot.lane.b32.xlu0 %v231, 64
    %v234 = vpop.permute.xlu0 %233
    %v236 = vsel %vm162, %v234, 0
    %238 = vmatprep.subr.bf16.mxu0 0
    %239 = vmatpush1.bf16.msra.mxu0 %v158
    %240 = vmatprep.subr.bf16.mxu0 0
    %241 = vmatpush1.bf16.msra.mxu0 %v159
    %242 = vmatprep.subr.bf16.mxu0 0
    %243 = vmatpush1.bf16.msra.mxu0 0
    %244 = vmatprep.subr.bf16.mxu0 0
    %245 = vmatpush1.bf16.msra.mxu0 0
    %246 = vmatprep.subr.bf16.mxu0 0
    %247 = vmatpush1.bf16.msra.mxu0 0
    %248 = vmatprep.subr.bf16.mxu0 0
    %249 = vmatpush1.bf16.msra.mxu0 0
    %250 = vmatprep.subr.bf16.mxu0 0
    %251 = vmatpush1.bf16.msra.mxu0 0
    %252 = vmatprep.subr.bf16.mxu0 0
    %253 = vmatpush1.bf16.msra.mxu0 0
    %254 = vmatprep.subr.bf16.mxu0 0
    %255 = vmatpush1.bf16.msra.mxu0 0
    %256 = vmatprep.subr.bf16.mxu0 0
    %257 = vmatpush1.bf16.msra.mxu0 0
    %258 = vmatprep.subr.bf16.mxu0 0
    %259 = vmatpush1.bf16.msra.mxu0 0
    %260 = vmatprep.subr.bf16.mxu0 0
    %261 = vmatpush1.bf16.msra.mxu0 0
    %262 = vmatprep.subr.bf16.mxu0 0
    %263 = vmatpush1.bf16.msra.mxu0 0
    %264 = vmatprep.subr.bf16.mxu0 0
    %265 = vmatpush1.bf16.msra.mxu0 0
    %266 = vmatprep.subr.bf16.mxu0 0
    %267 = vmatpush1.bf16.msra.mxu0 0
    %268 = vmatprep.subr.bf16.mxu0 0
    %269 = vmatpush1.bf16.msra.mxu0 0
    %270 = vmatprep.mubr.bf16.mxu0 0
    %271 = vmatmul.mubr.bf16.gmra.mrb[0].mxu0 %v236
    %v272 = vpop.f32.mrb[0].mxu0
    %v273 = vadd.f32 0.0, %v272
    %v274 = vpop.f32.mrb[0].mxu0
    %v275 = vpop.f32.mrb[0].mxu0
    %v276 = vpop.f32.mrb[0].mxu0
    %277 = vdwg.mxu0
    %v278 = vadd.f32 %v123, %v273
    %v279 = vxor.u32 %v278, 2147483648
    %v280 = vmul.f32 %v279, 1.442695
    %v281 = vpow.pop %v280
    %v282 = vadd.f32 %v281, 1.0
    %v283 = vrcp.pop %v282
    %v284 = vmul.f32 1.0, %v283
    %v285 = vtanh.pop %v278
    %v286 = vmul.f32 %v284, %v224
    %288 = vrot.lane.b32.xlu0 %v285, 32
    %v289 = vpop.permute.xlu0 %288
    %v291 = vmul.f32 %v284, %v289
    %293 = vrot.lane.b32.xlu0 %v291, 32
    %v294 = vpop.permute.xlu0 %293
    %v296 = vadd.f32 %v286, %v294
    %v297 = vtanh.pop %v296
    %299 = vrot.lane.b32.xlu0 %v297, 32
    %v300 = vpop.permute.xlu0 %299
    %v302 = vmul.f32 %v284, %v300
    %v303 = vpack.c.bf16 %v302, %v302
    %305 = vrot.lane.b32.xlu0 %v303, 64
    %v306 = vpop.permute.xlu0 %305
    %v308 = vsel %vm162, %v306, 0
    %310 = vmatprep.subr.bf16.mxu0 0
    %311 = vmatpush1.bf16.msra.mxu0 %v158
    %312 = vmatprep.subr.bf16.mxu0 0
    %313 = vmatpush1.bf16.msra.mxu0 %v159
    %314 = vmatprep.subr.bf16.mxu0 0
    %315 = vmatpush1.bf16.msra.mxu0 0
    %316 = vmatprep.subr.bf16.mxu0 0
    %317 = vmatpush1.bf16.msra.mxu0 0
    %318 = vmatprep.subr.bf16.mxu0 0
    %319 = vmatpush1.bf16.msra.mxu0 0
    %320 = vmatprep.subr.bf16.mxu0 0
    %321 = vmatpush1.bf16.msra.mxu0 0
    %322 = vmatprep.subr.bf16.mxu0 0
    %323 = vmatpush1.bf16.msra.mxu0 0
    %324 = vmatprep.subr.bf16.mxu0 0
    %325 = vmatpush1.bf16.msra.mxu0 0
    %326 = vmatprep.subr.bf16.mxu0 0
    %327 = vmatpush1.bf16.msra.mxu0 0
    %328 = vmatprep.subr.bf16.mxu0 0
    %329 = vmatpush1.bf16.msra.mxu0 0
    %330 = vmatprep.subr.bf16.mxu0 0
    %331 = vmatpush1.bf16.msra.mxu0 0
    %332 = vmatprep.subr.bf16.mxu0 0
    %333 = vmatpush1.bf16.msra.mxu0 0
    %334 = vmatprep.subr.bf16.mxu0 0
    %335 = vmatpush1.bf16.msra.mxu0 0
    %336 = vmatprep.subr.bf16.mxu0 0
    %337 = vmatpush1.bf16.msra.mxu0 0
    %338 = vmatprep.subr.bf16.mxu0 0
    %339 = vmatpush1.bf16.msra.mxu0 0
    %340 = vmatprep.subr.bf16.mxu0 0
    %341 = vmatpush1.bf16.msra.mxu0 0
    %342 = vmatprep.mubr.bf16.mxu0 0
    %343 = vmatmul.mubr.bf16.gmra.mrb[0].mxu0 %v308
    %v344 = vpop.f32.mrb[0].mxu0
    %v345 = vadd.f32 0.0, %v344
    %v346 = vpop.f32.mrb[0].mxu0
    %v347 = vpop.f32.mrb[0].mxu0
    %v348 = vpop.f32.mrb[0].mxu0
    %349 = vdwg.mxu0
    %v350 = vadd.f32 %v128, %v345
    %v351 = vxor.u32 %v350, 2147483648
    %v352 = vmul.f32 %v351, 1.442695
    %v353 = vpow.pop %v352
    %v354 = vadd.f32 %v353, 1.0
    %v355 = vrcp.pop %v354
    %v356 = vmul.f32 1.0, %v355
    %v357 = vtanh.pop %v350
    %v358 = vmul.f32 %v356, %v296
    %360 = vrot.lane.b32.xlu0 %v357, 32
    %v361 = vpop.permute.xlu0 %360
    %v363 = vmul.f32 %v356, %v361
    %365 = vrot.lane.b32.xlu0 %v363, 32
    %v366 = vpop.permute.xlu0 %365
    %v368 = vadd.f32 %v358, %v366
    %v369 = vtanh.pop %v368
    %371 = vrot.lane.b32.xlu0 %v369, 32
    %v372 = vpop.permute.xlu0 %371
    %v374 = vmul.f32 %v356, %v372
    %v375 = vpack.c.bf16 %v374, %v374
    %377 = vrot.lane.b32.xlu0 %v375, 64
    %v378 = vpop.permute.xlu0 %377
    %v380 = vsel %vm162, %v378, 0
    %382 = vmatprep.subr.bf16.mxu0 0
    %383 = vmatpush1.bf16.msra.mxu0 %v158
    %384 = vmatprep.subr.bf16.mxu0 0
    %385 = vmatpush1.bf16.msra.mxu0 %v159
    %386 = vmatprep.subr.bf16.mxu0 0
    %387 = vmatpush1.bf16.msra.mxu0 0
    %388 = vmatprep.subr.bf16.mxu0 0
    %389 = vmatpush1.bf16.msra.mxu0 0
    %390 = vmatprep.subr.bf16.mxu0 0
    %391 = vmatpush1.bf16.msra.mxu0 0
    %392 = vmatprep.subr.bf16.mxu0 0
    %393 = vmatpush1.bf16.msra.mxu0 0
    %394 = vmatprep.subr.bf16.mxu0 0
    %395 = vmatpush1.bf16.msra.mxu0 0
    %396 = vmatprep.subr.bf16.mxu0 0
    %397 = vmatpush1.bf16.msra.mxu0 0
    %398 = vmatprep.subr.bf16.mxu0 0
    %399 = vmatpush1.bf16.msra.mxu0 0
    %400 = vmatprep.subr.bf16.mxu0 0
    %401 = vmatpush1.bf16.msra.mxu0 0
    %402 = vmatprep.subr.bf16.mxu0 0
    %403 = vmatpush1.bf16.msra.mxu0 0
    %404 = vmatprep.subr.bf16.mxu0 0
    %405 = vmatpush1.bf16.msra.mxu0 0
    %406 = vmatprep.subr.bf16.mxu0 0
    %407 = vmatpush1.bf16.msra.mxu0 0
    %408 = vmatprep.subr.bf16.mxu0 0
    %409 = vmatpush1.bf16.msra.mxu0 0
    %410 = vmatprep.subr.bf16.mxu0 0
    %411 = vmatpush1.bf16.msra.mxu0 0
    %412 = vmatprep.subr.bf16.mxu0 0
    %413 = vmatpush1.bf16.msra.mxu0 0
    %414 = vmatprep.mubr.bf16.mxu0 0
    %415 = vmatmul.mubr.bf16.gmra.mrb[0].mxu0 %v380
    %v416 = vpop.f32.mrb[0].mxu0
    %v417 = vadd.f32 0.0, %v416
    %v418 = vpop.f32.mrb[0].mxu0
    %v419 = vpop.f32.mrb[0].mxu0
    %v420 = vpop.f32.mrb[0].mxu0
    %421 = vdwg.mxu0
    %v422 = vadd.f32 %v131, %v417
    %v423 = vxor.u32 %v422, 2147483648
    %v424 = vmul.f32 %v423, 1.442695
    %v425 = vpow.pop %v424
    %v426 = vadd.f32 %v425, 1.0
    %v427 = vrcp.pop %v426
    %v428 = vmul.f32 1.0, %v427
    %v429 = vtanh.pop %v422
    %v430 = vmul.f32 %v428, %v368
    %432 = vrot.lane.b32.xlu0 %v429, 32
    %v433 = vpop.permute.xlu0 %432
    %v435 = vmul.f32 %v428, %v433
    %437 = vrot.lane.b32.xlu0 %v435, 32
    %v438 = vpop.permute.xlu0 %437
    %v440 = vadd.f32 %v430, %v438
    %v441 = vtanh.pop %v440
    %443 = vrot.lane.b32.xlu0 %v441, 32
    %v444 = vpop.permute.xlu0 %443
    %v446 = vmul.f32 %v428, %v444
    %v447 = vpack.c.bf16 %v446, %v446
    %449 = vrot.lane.b32.xlu0 %v447, 64
    %v450 = vpop.permute.xlu0 %449
    %v452 = vsel %vm162, %v450, 0
    %454 = vmatprep.subr.bf16.mxu0 0
    %455 = vmatpush1.bf16.msra.mxu0 %v158
    %456 = vmatprep.subr.bf16.mxu0 0
    %457 = vmatpush1.bf16.msra.mxu0 %v159
    %458 = vmatprep.subr.bf16.mxu0 0
    %459 = vmatpush1.bf16.msra.mxu0 0
    %460 = vmatprep.subr.bf16.mxu0 0
    %461 = vmatpush1.bf16.msra.mxu0 0
    %462 = vmatprep.subr.bf16.mxu0 0
    %463 = vmatpush1.bf16.msra.mxu0 0
    %464 = vmatprep.subr.bf16.mxu0 0
    %465 = vmatpush1.bf16.msra.mxu0 0
    %466 = vmatprep.subr.bf16.mxu0 0
    %467 = vmatpush1.bf16.msra.mxu0 0
    %468 = vmatprep.subr.bf16.mxu0 0
    %469 = vmatpush1.bf16.msra.mxu0 0
    %470 = vmatprep.subr.bf16.mxu0 0
    %471 = vmatpush1.bf16.msra.mxu0 0
    %472 = vmatprep.subr.bf16.mxu0 0
    %473 = vmatpush1.bf16.msra.mxu0 0
    %474 = vmatprep.subr.bf16.mxu0 0
    %475 = vmatpush1.bf16.msra.mxu0 0
    %476 = vmatprep.subr.bf16.mxu0 0
    %477 = vmatpush1.bf16.msra.mxu0 0
    %478 = vmatprep.subr.bf16.mxu0 0
    %479 = vmatpush1.bf16.msra.mxu0 0
    %480 = vmatprep.subr.bf16.mxu0 0
    %481 = vmatpush1.bf16.msra.mxu0 0
    %482 = vmatprep.subr.bf16.mxu0 0
    %483 = vmatpush1.bf16.msra.mxu0 0
    %484 = vmatprep.subr.bf16.mxu0 0
    %485 = vmatpush1.bf16.msra.mxu0 0
    %486 = vmatprep.mubr.bf16.mxu0 0
    %487 = vmatmul.mubr.bf16.gmra.mrb[0].mxu0 %v452
    %v488 = vpop.f32.mrb[0].mxu0
    %v489 = vadd.f32 0.0, %v488
    %v490 = vpop.f32.mrb[0].mxu0
    %v491 = vpop.f32.mrb[0].mxu0
    %v492 = vpop.f32.mrb[0].mxu0
    %493 = vdwg.mxu0
    %v494 = vadd.f32 %v136, %v489
    %v495 = vxor.u32 %v494, 2147483648
    %v496 = vmul.f32 %v495, 1.442695
    %v497 = vpow.pop %v496
    %v498 = vadd.f32 %v497, 1.0
    %v499 = vrcp.pop %v498
    %v500 = vmul.f32 1.0, %v499
    %v501 = vtanh.pop %v494
    %v502 = vmul.f32 %v500, %v440
    %504 = vrot.lane.b32.xlu0 %v501, 32
    %v505 = vpop.permute.xlu0 %504
    %v507 = vmul.f32 %v500, %v505
    %509 = vrot.lane.b32.xlu0 %v507, 32
    %v510 = vpop.permute.xlu0 %509
    %v512 = vadd.f32 %v502, %v510
    %v513 = vtanh.pop %v512
    %515 = vrot.lane.b32.xlu0 %v513, 32
    %v516 = vpop.permute.xlu0 %515
    %v518 = vmul.f32 %v500, %v516
    %v519 = vpack.c.bf16 %v518, %v518
    %521 = vrot.lane.b32.xlu0 %v519, 64
    %v522 = vpop.permute.xlu0 %521
    %v524 = vsel %vm162, %v522, 0
    %526 = vmatprep.subr.bf16.mxu0 0
    %527 = vmatpush1.bf16.msra.mxu0 %v158
    %528 = vmatprep.subr.bf16.mxu0 0
    %529 = vmatpush1.bf16.msra.mxu0 %v159
    %530 = vmatprep.subr.bf16.mxu0 0
    %531 = vmatpush1.bf16.msra.mxu0 0
    %532 = vmatprep.subr.bf16.mxu0 0
    %533 = vmatpush1.bf16.msra.mxu0 0
    %534 = vmatprep.subr.bf16.mxu0 0
    %535 = vmatpush1.bf16.msra.mxu0 0
    %536 = vmatprep.subr.bf16.mxu0 0
    %537 = vmatpush1.bf16.msra.mxu0 0
    %538 = vmatprep.subr.bf16.mxu0 0
    %539 = vmatpush1.bf16.msra.mxu0 0
    %540 = vmatprep.subr.bf16.mxu0 0
    %541 = vmatpush1.bf16.msra.mxu0 0
    %542 = vmatprep.subr.bf16.mxu0 0
    %543 = vmatpush1.bf16.msra.mxu0 0
    %544 = vmatprep.subr.bf16.mxu0 0
    %545 = vmatpush1.bf16.msra.mxu0 0
    %546 = vmatprep.subr.bf16.mxu0 0
    %547 = vmatpush1.bf16.msra.mxu0 0
    %548 = vmatprep.subr.bf16.mxu0 0
    %549 = vmatpush1.bf16.msra.mxu0 0
    %550 = vmatprep.subr.bf16.mxu0 0
    %551 = vmatpush1.bf16.msra.mxu0 0
    %552 = vmatprep.subr.bf16.mxu0 0
    %553 = vmatpush1.bf16.msra.mxu0 0
    %554 = vmatprep.subr.bf16.mxu0 0
    %555 = vmatpush1.bf16.msra.mxu0 0
    %556 = vmatprep.subr.bf16.mxu0 0
    %557 = vmatpush1.bf16.msra.mxu0 0
    %558 = vmatprep.mubr.bf16.mxu0 0
    %559 = vmatmul.mubr.bf16.gmra.mrb[0].mxu0 %v524
    %v560 = vpop.f32.mrb[0].mxu0
    %v561 = vadd.f32 0.0, %v560
    %v562 = vpop.f32.mrb[0].mxu0
    %v563 = vpop.f32.mrb[0].mxu0
    %v564 = vpop.f32.mrb[0].mxu0
    %565 = vdwg.mxu0
    %v566 = vadd.f32 %v139, %v561
    %v567 = vxor.u32 %v566, 2147483648
    %v568 = vmul.f32 %v567, 1.442695
    %v569 = vpow.pop %v568
    %v570 = vadd.f32 %v569, 1.0
    %v571 = vrcp.pop %v570
    %v572 = vmul.f32 1.0, %v571
    %v573 = vtanh.pop %v566
    %v574 = vmul.f32 %v572, %v512
    %576 = vrot.lane.b32.xlu0 %v573, 32
    %v577 = vpop.permute.xlu0 %576
    %v579 = vmul.f32 %v572, %v577
    %581 = vrot.lane.b32.xlu0 %v579, 32
    %v582 = vpop.permute.xlu0 %581
    %v584 = vadd.f32 %v574, %v582
    %v585 = vtanh.pop %v584
    %587 = vrot.lane.b32.xlu0 %v585, 32
    %v588 = vpop.permute.xlu0 %587
    %v590 = vmul.f32 %v572, %v588
    %v591 = vpack.c.bf16 %v590, %v590
    %593 = vrot.lane.b32.xlu0 %v591, 64
    %v594 = vpop.permute.xlu0 %593
    %v596 = vsel %vm162, %v594, 0
    %598 = vmatprep.subr.bf16.mxu0 0
    %599 = vmatpush1.bf16.msra.mxu0 %v158
    %600 = vmatprep.subr.bf16.mxu0 0
    %601 = vmatpush1.bf16.msra.mxu0 %v159
    %602 = vmatprep.subr.bf16.mxu0 0
    %603 = vmatpush1.bf16.msra.mxu0 0
    %604 = vmatprep.subr.bf16.mxu0 0
    %605 = vmatpush1.bf16.msra.mxu0 0
    %606 = vmatprep.subr.bf16.mxu0 0
    %607 = vmatpush1.bf16.msra.mxu0 0
    %608 = vmatprep.subr.bf16.mxu0 0
    %609 = vmatpush1.bf16.msra.mxu0 0
    %610 = vmatprep.subr.bf16.mxu0 0
    %611 = vmatpush1.bf16.msra.mxu0 0
    %612 = vmatprep.subr.bf16.mxu0 0
    %613 = vmatpush1.bf16.msra.mxu0 0
    %614 = vmatprep.subr.bf16.mxu0 0
    %615 = vmatpush1.bf16.msra.mxu0 0
    %616 = vmatprep.subr.bf16.mxu0 0
    %617 = vmatpush1.bf16.msra.mxu0 0
    %618 = vmatprep.subr.bf16.mxu0 0
    %619 = vmatpush1.bf16.msra.mxu0 0
    %620 = vmatprep.subr.bf16.mxu0 0
    %621 = vmatpush1.bf16.msra.mxu0 0
    %622 = vmatprep.subr.bf16.mxu0 0
    %623 = vmatpush1.bf16.msra.mxu0 0
    %624 = vmatprep.subr.bf16.mxu0 0
    %625 = vmatpush1.bf16.msra.mxu0 0
    %626 = vmatprep.subr.bf16.mxu0 0
    %627 = vmatpush1.bf16.msra.mxu0 0
    %628 = vmatprep.subr.bf16.mxu0 0
    %629 = vmatpush1.bf16.msra.mxu0 0
    %630 = vmatprep.mubr.bf16.mxu0 0
    %631 = vmatmul.mubr.bf16.gmra.mrb[0].mxu0 %v596
    %v632 = vpop.f32.mrb[0].mxu0
    %v633 = vadd.f32 0.0, %v632
    %v634 = vpop.f32.mrb[0].mxu0
    %v635 = vpop.f32.mrb[0].mxu0
    %v636 = vpop.f32.mrb[0].mxu0
    %637 = vdwg.mxu0
    %v638 = vadd.f32 %v144, %v633
    %v639 = vxor.u32 %v638, 2147483648
    %v640 = vmul.f32 %v639, 1.442695
    %v641 = vpow.pop %v640
    %v642 = vadd.f32 %v641, 1.0
    %v643 = vrcp.pop %v642
    %v644 = vmul.f32 1.0, %v643
    %v645 = vtanh.pop %v638
    %v646 = vmul.f32 %v644, %v584
    %648 = vrot.lane.b32.xlu0 %v645, 32
    %v649 = vpop.permute.xlu0 %648
    %v651 = vmul.f32 %v644, %v649
    %653 = vrot.lane.b32.xlu0 %v651, 32
    %v654 = vpop.permute.xlu0 %653
    %v656 = vadd.f32 %v646, %v654
    %v657 = vtanh.pop %v656
    %659 = vrot.lane.b32.xlu0 %v657, 32
    %v660 = vpop.permute.xlu0 %659
    %v662 = vmul.f32 %v644, %v660
    %v663 = vpack.c.bf16 %v662, %v662
    %665 = vrot.lane.b32.xlu0 %v663, 64
    %v666 = vpop.permute.xlu0 %665
    %v668 = vsel %vm162, %v666, 0
    %670 = vmatprep.subr.bf16.mxu0 0
    %671 = vmatpush1.bf16.msra.mxu0 %v158
    %672 = vmatprep.subr.bf16.mxu0 0
    %673 = vmatpush1.bf16.msra.mxu0 %v159
    %674 = vmatprep.subr.bf16.mxu0 0
    %675 = vmatpush1.bf16.msra.mxu0 0
    %676 = vmatprep.subr.bf16.mxu0 0
    %677 = vmatpush1.bf16.msra.mxu0 0
    %678 = vmatprep.subr.bf16.mxu0 0
    %679 = vmatpush1.bf16.msra.mxu0 0
    %680 = vmatprep.subr.bf16.mxu0 0
    %681 = vmatpush1.bf16.msra.mxu0 0
    %682 = vmatprep.subr.bf16.mxu0 0
    %683 = vmatpush1.bf16.msra.mxu0 0
    %684 = vmatprep.subr.bf16.mxu0 0
    %685 = vmatpush1.bf16.msra.mxu0 0
    %686 = vmatprep.subr.bf16.mxu0 0
    %687 = vmatpush1.bf16.msra.mxu0 0
    %688 = vmatprep.subr.bf16.mxu0 0
    %689 = vmatpush1.bf16.msra.mxu0 0
    %690 = vmatprep.subr.bf16.mxu0 0
    %691 = vmatpush1.bf16.msra.mxu0 0
    %692 = vmatprep.subr.bf16.mxu0 0
    %693 = vmatpush1.bf16.msra.mxu0 0
    %694 = vmatprep.subr.bf16.mxu0 0
    %695 = vmatpush1.bf16.msra.mxu0 0
    %696 = vmatprep.subr.bf16.mxu0 0
    %697 = vmatpush1.bf16.msra.mxu0 0
    %698 = vmatprep.subr.bf16.mxu0 0
    %699 = vmatpush1.bf16.msra.mxu0 0
    %700 = vmatprep.subr.bf16.mxu0 0
    %701 = vmatpush1.bf16.msra.mxu0 0
    %702 = vmatprep.mubr.bf16.mxu0 0
    %703 = vmatmul.mubr.bf16.gmra.mrb[0].mxu0 %v668
    %v704 = vpop.f32.mrb[0].mxu0
    %v705 = vadd.f32 0.0, %v704
    %v706 = vpop.f32.mrb[0].mxu0
    %v707 = vpop.f32.mrb[0].mxu0
    %v708 = vpop.f32.mrb[0].mxu0
    %709 = vdwg.mxu0
    %v710 = vadd.f32 %v147, %v705
    %v711 = vxor.u32 %v710, 2147483648
    %v712 = vmul.f32 %v711, 1.442695
    %v713 = vpow.pop %v712
    %v714 = vadd.f32 %v713, 1.0
    %v715 = vrcp.pop %v714
    %v716 = vmul.f32 1.0, %v715
    %v717 = vtanh.pop %v710
    %v718 = vmul.f32 %v716, %v656
    %720 = vrot.lane.b32.xlu0 %v717, 32
    %v721 = vpop.permute.xlu0 %720
    %v723 = vmul.f32 %v716, %v721
    %725 = vrot.lane.b32.xlu0 %v723, 32
    %v726 = vpop.permute.xlu0 %725
    %v728 = vadd.f32 %v718, %v726
    %v729 = vtanh.pop %v728
    %731 = vrot.lane.b32.xlu0 %v729, 32
    %v732 = vpop.permute.xlu0 %731
    %v734 = vmul.f32 %v716, %v732
    %v735 = vmax.f32 %v734, 0.0
    %v736 = vpack.c.bf16 %v735, %v735
    %v737 = vld [vmem:[%s4] sm:$0xf]
    %v738 = vld [vmem:[%s4 + $0x4] sm:$0xf]
    %v739 = vld [vmem:[%s4 + $0x8] sm:$0xf]
    %v740 = vld [vmem:[%s4 + $0xc] sm:$0xf]
    %v741 = vld [vmem:[%s5] sm:$0x1]
    %v743 = vlaneseq
    %v744 = vshrl.u32 %v743, 7
    %v745 = vsub.s32 0, %v744
    %v746 = vrot.slane %v741, %v745
    %749 = vrot.lane.b32.xlu0 %v736, 64
    %v750 = vpop.permute.xlu0 %749
    %v755 = vunpack.c.l.b16 %v737
    %v756 = vunpack.c.l.b16 %v738
    %v757 = vunpack.c.l.b16 %v739
    %v758 = vunpack.c.l.b16 %v740
    %v759 = vpack.c.b16 %v756, %v755
    %v760 = vpack.c.b16 %v758, %v757
    %v764 = vsel %vm162, %v750, 0
    %766 = vmatprep.subr.bf16.mxu0 0
    %767 = vmatpush1.bf16.msra.mxu0 %v759
    %768 = vmatprep.subr.bf16.mxu0 0
    %769 = vmatpush1.bf16.msra.mxu0 %v760
    %770 = vmatprep.subr.bf16.mxu0 0
    %771 = vmatpush1.bf16.msra.mxu0 0
    %772 = vmatprep.subr.bf16.mxu0 0
    %773 = vmatpush1.bf16.msra.mxu0 0
    %774 = vmatprep.subr.bf16.mxu0 0
    %775 = vmatpush1.bf16.msra.mxu0 0
    %776 = vmatprep.subr.bf16.mxu0 0
    %777 = vmatpush1.bf16.msra.mxu0 0
    %778 = vmatprep.subr.bf16.mxu0 0
    %779 = vmatpush1.bf16.msra.mxu0 0
    %780 = vmatprep.subr.bf16.mxu0 0
    %781 = vmatpush1.bf16.msra.mxu0 0
    %782 = vmatprep.subr.bf16.mxu0 0
    %783 = vmatpush1.bf16.msra.mxu0 0
    %784 = vmatprep.subr.bf16.mxu0 0
    %785 = vmatpush1.bf16.msra.mxu0 0
    %786 = vmatprep.subr.bf16.mxu0 0
    %787 = vmatpush1.bf16.msra.mxu0 0
    %788 = vmatprep.subr.bf16.mxu0 0
    %789 = vmatpush1.bf16.msra.mxu0 0
    %790 = vmatprep.subr.bf16.mxu0 0
    %791 = vmatpush1.bf16.msra.mxu0 0
    %792 = vmatprep.subr.bf16.mxu0 0
    %793 = vmatpush1.bf16.msra.mxu0 0
    %794 = vmatprep.subr.bf16.mxu0 0
    %795 = vmatpush1.bf16.msra.mxu0 0
    %796 = vmatprep.subr.bf16.mxu0 0
    %797 = vmatpush1.bf16.msra.mxu0 0
    %798 = vmatprep.mubr.bf16.mxu0 0
    %799 = vmatmul.mubr.bf16.gmra.mrb[0].mxu0 %v764
    %v800 = vpop.f32.mrb[0].mxu0
    %v801 = vadd.f32 %v746, %v800
    %v802 = vpop.f32.mrb[0].mxu0
    %v803 = vpop.f32.mrb[0].mxu0
    %v804 = vpop.f32.mrb[0].mxu0
    %805 = vdwg.mxu0
    %v806 = vtanh.pop %v801
    %v807 = vmul.f32 %v806, 2.0
    %vm808 = vcmask 64512
    %809 = vst.msk [vmem:[#allocation2] sm:$0xff] %vm808, %v807
    // Predicated region
    $region26: #{tpu_custom_call.1} parent=1 // pred_check
      _
    $region27: #{tpu_custom_call.1} parent=1 // pred_check_branch
      %811 = sbr.rel (0) target = $region29
    $region28: #{tpu_custom_call.1} parent=1 // pred_region
      %s813 = ssub.s32 128, 128
      %814 = vsyncadd [#allocation3], %s813
      %s816 = sshll.u32 [#allocation2], 4
      %s817 = int_to_ptr.vmem [resolvable:$true] %s816
      %819 = dma.vmem_to_hbm [thread:$0]  %s817, 128, %s6, [#allocation3]
    $region29: #{tpu_custom_call.1} parent=1 // pred_fallthru
      _
    // Predicated region
    $region30: #{tpu_custom_call.1} parent=1 // pred_check
      _
    $region31: #{tpu_custom_call.1} parent=1 // pred_check_branch
      %821 = sbr.rel (0) target = $region33
    $region32: #{tpu_custom_call.1} parent=1 // pred_region
      %822 = dma.done [#allocation3], 128
    $region33: #{tpu_custom_call.1} parent=1 // pred_fallthru
      _
    %823 = vsyncpa [#allocation3], 1

</llo_original>
